<compile_context>
chip_gen: v5e
topology: v5e:2x2
jax: 0.10.0
libtpu: 0.0.40
codegen_flags: <defaults>
</compile_context>

<pallas_src>
import functools

import jax
import jax.numpy as jnp
from jax.experimental import pallas as pl
from jax.experimental.pallas import tpu as pltpu

_SUBLANE = 8


def _round_up(x, m):
    return ((x + m - 1) // m) * m


def _cdiv(a, b):
    return (a + b - 1) // b


def _linear2_kernel(emb_ref, feat_ref, w_emb_ref, w_feat_ref, b_ref, o_ref):
    # Single logical contraction over combined K, expressed as two MXU dots
    # into one f32 accumulator (avoids concatenating activations in HBM).
    acc = jnp.dot(emb_ref[...], w_emb_ref[...], preferred_element_type=jnp.float32)
    acc = acc + jnp.dot(feat_ref[...], w_feat_ref[...],
                        preferred_element_type=jnp.float32)
    o_ref[...] = (acc + b_ref[...]).astype(o_ref.dtype)


def _linear1_kernel(emb_ref, w_emb_ref, b_ref, o_ref):
    acc = jnp.dot(emb_ref[...], w_emb_ref[...], preferred_element_type=jnp.float32)
    o_ref[...] = (acc + b_ref[...]).astype(o_ref.dtype)


def prepare_linear_params(weight, bias, input_size):
    """One-time parameter prep (outside the hot path).

    weight: [output_size, input_size + num_features]  (nn.Linear layout)
    bias:   [output_size]
    Returns K-major weight halves and a 2-D bias row (no padding needed).
    """
    w_emb = jnp.asarray(weight[:, :input_size].T)    # (input_size,   N)
    w_feat = jnp.asarray(weight[:, input_size:].T)   # (num_features, N), possibly (0, N)
    b2d = jnp.asarray(bias)[None, :]                 # (1, N)
    return w_emb, w_feat, b2d


def _pick_tm(batch):
    if batch <= 32:
        # One full-extent tile.
        return max(_round_up(batch, _SUBLANE), _SUBLANE)
    if batch <= 2048:
        # >= 2 grid steps so both v7x TensorCores get work (harmless on v5e/v6e).
        return _round_up(_cdiv(batch, 2), _SUBLANE)
    # Streaming path: big tiles amortize the ~0.35us per-step pipeline overhead.
    return 1024


@functools.partial(jax.jit, static_argnames=("min_pallas_rows",))
def linear_module_forward(final_embeddings, feature_vecs, w_emb, w_feat, b2d,
                          *, min_pallas_rows=0):
    """Pallas implementation of LinearModule.forward.

    final_embeddings: [B, input_size]
    feature_vecs:     [B, num_features] or None (num_features == 0 case)
    w_emb, w_feat, b2d: from prepare_linear_params.
    """
    B, input_size = final_embeddings.shape
    N = w_emb.shape[1]
    has_feat = (feature_vecs is not None) and (feature_vecs.shape[1] > 0)
    num_features = feature_vecs.shape[1] if has_feat else 0

    # Small-batch fast path: at ~80 KFLOP the pallas launch overhead dominates,
    # so optionally let XLA fuse this into the producer of final_embeddings.
    if B < min_pallas_rows:
        y = final_embeddings @ w_emb
        if has_feat:
            y = y + feature_vecs @ w_feat
        return y + b2d

    tm = _pick_tm(B)
    grid = (_cdiv(B, tm),)

    itemsize = jnp.dtype(final_embeddings.dtype).itemsize
    k_total = input_size + num_features
    cost = pl.CostEstimate(
        flops=2 * B * k_total * N,
        transcendentals=0,
        bytes_accessed=(B * k_total + k_total * N + N + B * N) * itemsize,
    )

    out_shape = jax.ShapeDtypeStruct((B, N), final_embeddings.dtype)
    out_spec = pl.BlockSpec((tm, N), lambda i: (i, 0))
    params = pltpu.CompilerParams(dimension_semantics=("parallel",))
    # NOTE(v7x): at these shapes the stationary weight (< a few KiB) trivially
    # fits the 64 MiB VMEM; if K/N ever grow to multi-thousand, add an N/K grid
    # axis with a VMEM accumulator and set vmem_limit_bytes explicitly.

    if has_feat:
        return pl.pallas_call(
            _linear2_kernel,
            out_shape=out_shape,
            grid=grid,
            in_specs=[
                # Activations: streamed / double-buffered over the M grid axis.
                pl.BlockSpec((tm, input_size), lambda i: (i, 0)),
                pl.BlockSpec((tm, num_features), lambda i: (i, 0)),
                # Weights & bias: stationary (same block every step -> one DMA).
                pl.BlockSpec((input_size, N), lambda i: (0, 0)),
                pl.BlockSpec((num_features, N), lambda i: (0, 0)),
                pl.BlockSpec((1, N), lambda i: (0, 0)),
            ],
            out_specs=out_spec,
            compiler_params=params,
            cost_estimate=cost,
        )(final_embeddings, feature_vecs, w_emb, w_feat, b2d)

    return pl.pallas_call(
        _linear1_kernel,
        out_shape=out_shape,
        grid=grid,
        in_specs=[
            pl.BlockSpec((tm, input_size), lambda i: (i, 0)),
            pl.BlockSpec((input_size, N), lambda i: (0, 0)),
            pl.BlockSpec((1, N), lambda i: (0, 0)),
        ],
        out_specs=out_spec,
        compiler_params=params,
        cost_estimate=cost,
    )(final_embeddings, w_emb, b2d)


if __name__ == "__main__":
    # Module config: input_size=32, output_size=16, num_features=8.
    input_size, output_size, num_features = 32, 16, 8

    key = jax.random.PRNGKey(0)
    k_emb, k_feat, k_w, k_b, k_emb2, k_feat2 = jax.random.split(key, 6)

    fan_in = input_size + num_features
    bound = 1.0 / (fan_in ** 0.5)
    weight = jax.random.uniform(
        k_w, (output_size, fan_in), minval=-bound, maxval=bound, dtype=jnp.float32)
    bias = jax.random.uniform(
        k_b, (output_size,), minval=-bound, maxval=bound, dtype=jnp.float32)

    # One-time parameter prep (split + transpose happen here, not per call).
    w_emb, w_feat, b2d = prepare_linear_params(weight, bias, input_size)

    def reference(emb, feat):
        return jnp.concatenate([emb, feat], axis=-1) @ weight.T + bias

    # Case 1: tiny batch (the module's typical shape), forced through Pallas.
    B1 = 8
    emb1 = jax.random.normal(k_emb, (B1, input_size), dtype=jnp.float32)
    feat1 = jax.random.normal(k_feat, (B1, num_features), dtype=jnp.float32)
    out1 = jax.block_until_ready(
        linear_module_forward(emb1, feat1, w_emb, w_feat, b2d, min_pallas_rows=0))
    assert out1.shape == (B1, output_size)
    assert jnp.allclose(out1, reference(emb1, feat1), atol=1e-5, rtol=1e-5)

    # Case 2: larger batch exercising grid > 1 and a partial last block.
    B2 = 200
    emb2 = jax.random.normal(k_emb2, (B2, input_size), dtype=jnp.float32)
    feat2 = jax.random.normal(k_feat2, (B2, num_features), dtype=jnp.float32)
    out2 = jax.block_until_ready(
        linear_module_forward(emb2, feat2, w_emb, w_feat, b2d, min_pallas_rows=0))
    assert out2.shape == (B2, output_size)
    assert jnp.allclose(out2, reference(emb2, feat2), atol=1e-5, rtol=1e-5)

    print("KERNEL_OK")
</pallas_src>

<mosaic_0001>
module attributes {stable_mosaic.version = 11 : i64} {
  func.func @_linear2_kernel(%arg0: i32, %arg1: memref<8x32xf32, #tpu.memory_space<vmem>>, %arg2: memref<8x8xf32, #tpu.memory_space<vmem>>, %arg3: memref<32x16xf32, #tpu.memory_space<vmem>>, %arg4: memref<8x16xf32, #tpu.memory_space<vmem>>, %arg5: memref<1x16xf32, #tpu.memory_space<vmem>>, %arg6: memref<8x16xf32, #tpu.memory_space<vmem>>) attributes {dimension_semantics = [#tpu.dimension_semantics<parallel>], iteration_bounds = array<i64: 1>, scalar_prefetch = 0 : i64, scratch_operands = 0 : i64, tpu.core_type = #tpu.core_type<tc>, window_params = [{transform_indices = @transform_0, window_bounds = array<i64: 8, 32>}, {transform_indices = @transform_1, window_bounds = array<i64: 8, 8>}, {pipeline_mode = #tpu.pipeline_mode<synchronous>, transform_indices = @transform_2, window_bounds = array<i64: 32, 16>}, {pipeline_mode = #tpu.pipeline_mode<synchronous>, transform_indices = @transform_3, window_bounds = array<i64: 8, 16>}, {pipeline_mode = #tpu.pipeline_mode<synchronous>, transform_indices = @transform_4, window_bounds = array<i64: 1, 16>}, {transform_indices = @transform_5, window_bounds = array<i64: 8, 16>}]} {
    %c0 = arith.constant 0 : index
    %c0_0 = arith.constant 0 : index
    %0 = vector.load %arg1[%c0, %c0_0] : memref<8x32xf32, #tpu.memory_space<vmem>>, vector<8x32xf32>
    %c0_1 = arith.constant 0 : index
    %c0_2 = arith.constant 0 : index
    %1 = vector.load %arg3[%c0_1, %c0_2] : memref<32x16xf32, #tpu.memory_space<vmem>>, vector<32x16xf32>
    %cst = arith.constant dense<0.000000e+00> : vector<8x16xf32>
    %2 = tpu.matmul %0, %1, %cst {dimension_numbers = #tpu.dot_dimension_numbers<[1], [0], [0], [1], [0, 0, 1, 1], [], []>} : vector<8x32xf32>, vector<32x16xf32>, vector<8x16xf32> -> vector<8x16xf32>
    %c0_3 = arith.constant 0 : index
    %c0_4 = arith.constant 0 : index
    %3 = vector.load %arg2[%c0_3, %c0_4] : memref<8x8xf32, #tpu.memory_space<vmem>>, vector<8x8xf32>
    %c0_5 = arith.constant 0 : index
    %c0_6 = arith.constant 0 : index
    %4 = vector.load %arg4[%c0_5, %c0_6] : memref<8x16xf32, #tpu.memory_space<vmem>>, vector<8x16xf32>
    %cst_7 = arith.constant dense<0.000000e+00> : vector<8x16xf32>
    %5 = tpu.matmul %3, %4, %cst_7 {dimension_numbers = #tpu.dot_dimension_numbers<[1], [0], [0], [1], [0, 0, 1, 1], [], []>} : vector<8x8xf32>, vector<8x16xf32>, vector<8x16xf32> -> vector<8x16xf32>
    %6 = arith.addf %2, %5 : vector<8x16xf32>
    %c0_8 = arith.constant 0 : index
    %c0_9 = arith.constant 0 : index
    %7 = vector.load %arg5[%c0_8, %c0_9] : memref<1x16xf32, #tpu.memory_space<vmem>>, vector<1x16xf32>
    %8 = vector.broadcast %7 : vector<1x16xf32> to vector<8x16xf32>
    %9 = arith.addf %6, %8 : vector<8x16xf32>
    %c0_10 = arith.constant 0 : index
    %c0_11 = arith.constant 0 : index
    %10 = vector.load %arg6[%c0_10, %c0_11] : memref<8x16xf32, #tpu.memory_space<vmem>>, vector<8x16xf32>
    tpu.vector_store %arg6[%c0_10, %c0_11], %9 {strides = array<i32>} : memref<8x16xf32, #tpu.memory_space<vmem>>, vector<8x16xf32>,
    return
  }
  func.func @transform_0(%arg0: i32) -> (i32, i32) {
    %c0_i32 = arith.constant 0 : i32
    %c0_i32_0 = arith.constant 0 : i32
    return %arg0, %c0_i32 : i32, i32
  }
  func.func @transform_1(%arg0: i32) -> (i32, i32) {
    %c0_i32 = arith.constant 0 : i32
    %c0_i32_0 = arith.constant 0 : i32
    return %arg0, %c0_i32 : i32, i32
  }
  func.func @transform_2(%arg0: i32) -> (i32, i32) {
    %c0_i32 = arith.constant 0 : i32
    %c0_i32_0 = arith.constant 0 : i32
    %c0_i32_1 = arith.constant 0 : i32
    return %c0_i32, %c0_i32_0 : i32, i32
  }
  func.func @transform_3(%arg0: i32) -> (i32, i32) {
    %c0_i32 = arith.constant 0 : i32
    %c0_i32_0 = arith.constant 0 : i32
    %c0_i32_1 = arith.constant 0 : i32
    return %c0_i32, %c0_i32_0 : i32, i32
  }
  func.func @transform_4(%arg0: i32) -> (i32, i32) {
    %c0_i32 = arith.constant 0 : i32
    %c0_i32_0 = arith.constant 0 : i32
    %c0_i32_1 = arith.constant 0 : i32
    return %c0_i32, %c0_i32_0 : i32, i32
  }
  func.func @transform_5(%arg0: i32) -> (i32, i32) {
    %c0_i32 = arith.constant 0 : i32
    %c0_i32_0 = arith.constant 0 : i32
    return %arg0, %c0_i32 : i32, i32
  }
}

</mosaic_0001>

<llo_original>
// kernel: linear_module_forward.1
$region0: #{linear_module_forward.1}
  #allocation0 [shape = 'u32[]', space=smem, size = 0x4, offset = 0x4, fixed_abs, tag = 'smem constant byte address 0x4 - core index']
  #allocation1 [shape = 'u32[72,128]{1,0:T(1,128)}', space=vmem, size = 0x9000, scoped, tag = 'internal scratch']
  %s0 = inlined_call_operand.vmem [shape: f32[8,32], index: 0, kind: input, shape index: {}]
  %s1 = inlined_call_operand.vmem [shape: f32[8,8], index: 1, kind: input, shape index: {}]
  %s2 = inlined_call_operand.vmem [shape: f32[32,16], index: 2, kind: input, shape index: {}]
  %s3 = inlined_call_operand.vmem [shape: f32[8,16], index: 3, kind: input, shape index: {}]
  %s4 = inlined_call_operand.vmem [shape: f32[1,16], index: 4, kind: input, shape index: {}]
  %s5 = inlined_call_operand.hbm [shape: f32[8,16], index: 5, kind: output, shape index: {}]
  %s6 = sld [smem:[#allocation0]]
  $region30: #{linear_module_forward.1} parent=0
    _
  %s8 = ssub.s32 1, %s6
  %s9 = scalar_select 0, %s8, %s6
  $region1: #{linear_module_forward.1} parent=0
    #allocation2 [shape = 'u8[4096]{0}', space=vmem, size = 0x1000, scoped, tag = 'output window, operand 0, single buffered']
    #allocation3 [shape = 's32[1]{0}', space=sflag, size = 0x4, scoped, tag = 'scoped memory for linear_module_forward.1']
    %10 = vsyncpa [#allocation3], 0
    // Predicated region
    $region2: #{linear_module_forward.1} parent=1 // pred_check
      _
    $region3: #{linear_module_forward.1} parent=1 // pred_check_branch
      %12 = sbr.rel (0) target = $region5
    $region4: #{linear_module_forward.1} parent=1 // pred_region
      _
    $region5: #{linear_module_forward.1} parent=1 // pred_fallthru
      _
    // Predicated region
    $region6: #{linear_module_forward.1} parent=1 // pred_check
      _
    $region7: #{linear_module_forward.1} parent=1 // pred_check_branch
      %14 = sbr.rel (0) target = $region9
    $region8: #{linear_module_forward.1} parent=1 // pred_region
      _
    $region9: #{linear_module_forward.1} parent=1 // pred_fallthru
      _
    // Predicated region
    $region10: #{linear_module_forward.1} parent=1 // pred_check
      _
    $region11: #{linear_module_forward.1} parent=1 // pred_check_branch
      %16 = sbr.rel (0) target = $region13
    $region12: #{linear_module_forward.1} parent=1 // pred_region
      _
    $region13: #{linear_module_forward.1} parent=1 // pred_fallthru
      _
    // Predicated region
    $region14: #{linear_module_forward.1} parent=1 // pred_check
      _
    $region15: #{linear_module_forward.1} parent=1 // pred_check_branch
      %18 = sbr.rel (0) target = $region17
    $region16: #{linear_module_forward.1} parent=1 // pred_region
      _
    $region17: #{linear_module_forward.1} parent=1 // pred_fallthru
      _
    // Predicated region
    $region18: #{linear_module_forward.1} parent=1 // pred_check
      _
    $region19: #{linear_module_forward.1} parent=1 // pred_check_branch
      %20 = sbr.rel (0) target = $region21
    $region20: #{linear_module_forward.1} parent=1 // pred_region
      _
    $region21: #{linear_module_forward.1} parent=1 // pred_fallthru
      _
    %v21 = vld [vmem:[%s0] sm:$0xff]
    %v22 = vld [vmem:[%s2] sm:$0xff]
    %v23 = vld [vmem:[%s2 + $0x8] sm:$0xff]
    %v24 = vld [vmem:[%s2 + $0x10] sm:$0xff]
    %v25 = vld [vmem:[%s2 + $0x18] sm:$0xff]
    %v26 = vld [vmem:[%s1] sm:$0xff]
    %v27 = vld [vmem:[%s3] sm:$0xff]
    %vm28 = vcmask 64512
    %v30 = vsel %vm28, %v26, 0
    %32 = vmatpush.msra.mxu0 0.0
    %33 = vmatpush.msra.mxu0 0.0
    %34 = vmatpush.msra.mxu0 0.0
    %35 = vmatpush.msra.mxu0 0.0
    %36 = vmatpush.msra.mxu0 0.0
    %37 = vmatpush.msra.mxu0 0.0
    %38 = vmatpush.msra.mxu0 0.0
    %39 = vmatpush.msra.mxu0 0.0
    %40 = vmatpush.msra.mxu0 0.0
    %41 = vmatpush.msra.mxu0 0.0
    %42 = vmatpush.msra.mxu0 0.0
    %43 = vmatpush.msra.mxu0 0.0
    %44 = vmatpush.msra.mxu0 0.0
    %45 = vmatpush.msra.mxu0 0.0
    %46 = vmatpush.msra.mxu0 0.0
    %47 = vmatpush.msra.mxu0 %v27
    %48 = vmatmul.f32.gmra.mxu0 %v30
    %v49 = vpop.f32.mrf.mxu0
    %v50 = vadd.f32 0.0, %v49
    %51 = vdwg.mxu0
    %vm52 = vcmask 261120
    %v54 = vsel %vm52, %v21, 0
    %56 = vmatpush.msra.mxu0 0.0
    %57 = vmatpush.msra.mxu0 0.0
    %58 = vmatpush.msra.mxu0 0.0
    %59 = vmatpush.msra.mxu0 0.0
    %60 = vmatpush.msra.mxu0 0.0
    %61 = vmatpush.msra.mxu0 0.0
    %62 = vmatpush.msra.mxu0 0.0
    %63 = vmatpush.msra.mxu0 0.0
    %64 = vmatpush.msra.mxu0 0.0
    %65 = vmatpush.msra.mxu0 0.0
    %66 = vmatpush.msra.mxu0 0.0
    %67 = vmatpush.msra.mxu0 0.0
    %68 = vmatpush.msra.mxu0 %v25
    %69 = vmatpush.msra.mxu0 %v24
    %70 = vmatpush.msra.mxu0 %v23
    %71 = vmatpush.msra.mxu0 %v22
    %72 = vmatmul.f32.gmra.mxu0 %v54
    %v73 = vpop.f32.mrf.mxu0
    %v74 = vadd.f32 %v50, %v73
    %75 = vdwg.mxu0
    %v76 = vld [vmem:[%s4] sm:$0x1]
    %v78 = vperm.slane %v76, 0
    %v80 = vadd.f32 %v74, %v78
    %vm81 = vcmask 130048
    %82 = vst.msk [vmem:[#allocation2] sm:$0xff] %vm81, %v80
    // Predicated region
    $region22: #{linear_module_forward.1} parent=1 // pred_check
      _
    $region23: #{linear_module_forward.1} parent=1 // pred_check_branch
      %84 = sbr.rel (0) target = $region25
    $region24: #{linear_module_forward.1} parent=1 // pred_region
      %86 = vsyncadd [#allocation3], 0
      %s88 = sshll.u32 [#allocation2], 4
      %s89 = int_to_ptr.vmem [resolvable:$true] %s88
      %s90 = sshll.u32 %s5, 4
      %s91 = int_to_ptr.hbm [resolvable:$true] %s90
      %93 = dma.vmem_to_hbm [thread:$0]  %s89, 128, %s91, [#allocation3]
    $region25: #{linear_module_forward.1} parent=1 // pred_fallthru
      _
    // Predicated region
    $region26: #{linear_module_forward.1} parent=1 // pred_check
      _
    $region27: #{linear_module_forward.1} parent=1 // pred_check_branch
      %95 = sbr.rel (0) target = $region29
    $region28: #{linear_module_forward.1} parent=1 // pred_region
      %97 = dma.done [#allocation3], 128
    $region29: #{linear_module_forward.1} parent=1 // pred_fallthru
      _
    %98 = vsyncpa [#allocation3], 1

</llo_original>
